<compile_context>
chip_gen: v6e
topology: v6e:2x2x1
jax: 0.10.0
libtpu: 0.0.40
codegen_flags: <defaults>
</compile_context>

<pallas_src>
import functools

import jax
import jax.numpy as jnp
from jax import lax
from jax.experimental import pallas as pl
from jax.experimental.pallas import tpu as pltpu


# ---------------------------------------------------------------------------
# Kernels (transposed, lane-dense layout: activations are (W, tb), weights are
# pre-transposed so every dot is standard (M,K)@(K,N) orientation).
# ---------------------------------------------------------------------------
def _mesh_resident_kernel(x_ref, wt_ref, o_ref, *, n_active, fold_chain):
    """All active layers in one grid step; the weight stack is VMEM-resident.

    x_ref : (W, tb)            transposed batch tile (batch on lanes)
    wt_ref: (n_active, W, W)   wt_ref[k] = W_k^T (constant block, resident)
    o_ref : (W, tb)            transposed output tile
    """
    xt = x_ref[...].astype(jnp.float32)

    if fold_chain:
        # Fold W_eff^T = W_{L-1}^T @ ... @ W_0^T once (L-1 tiny WxW matmuls),
        # then a single lane-dense (W,W)@(W,tb) matmul per batch tile.  This
        # regroups f32 accumulation relative to the reference loop (<= 1e-4).
        w_eff_t = wt_ref[n_active - 1].astype(jnp.float32)
        if n_active <= 16:
            for k in range(n_active - 2, -1, -1):
                w_eff_t = jnp.dot(
                    w_eff_t, wt_ref[k], preferred_element_type=jnp.float32
                )
        else:
            # Deep chains: keep code size / live ranges bounded with a fori_loop
            # over a dynamic leading-axis index into the resident stack.
            def fold_step(i, acc):
                return jnp.dot(
                    acc, wt_ref[n_active - 1 - i], preferred_element_type=jnp.float32
                )

            w_eff_t = lax.fori_loop(1, n_active, fold_step, w_eff_t)
        out = jnp.dot(w_eff_t, xt, preferred_element_type=jnp.float32)
    else:
        # Exact per-layer application (same FP grouping as the reference loop).
        out = xt
        for k in range(n_active):
            out = jnp.dot(wt_ref[k], out, preferred_element_type=jnp.float32)

    o_ref[...] = out.astype(o_ref.dtype)


def _mesh_streamed_kernel(x_ref, wt_ref, o_ref, state_ref, *, group):
    """Fallback for weight stacks too large to sit resident in VMEM.

    Grid is (batch_tiles, n_groups); the layer-group axis is last ("arbitrary")
    so for a given batch tile all layer groups run back-to-back while the VMEM
    scratch `state_ref` carries the running (W, tb) activation.
    """
    j = pl.program_id(1)

    @pl.when(j == 0)
    def _():
        state_ref[...] = x_ref[...].astype(jnp.float32)

    st = state_ref[...]
    for g in range(group):  # short unrolled loop amortizes per-step overhead
        st = jnp.dot(wt_ref[g], st, preferred_element_type=jnp.float32)
    state_ref[...] = st

    @pl.when(j == pl.num_programs(1) - 1)
    def _():
        o_ref[...] = state_ref[...].astype(o_ref.dtype)


# ---------------------------------------------------------------------------
# Wrapper
# ---------------------------------------------------------------------------
def _vmem_capacity_bytes():
    try:
        cap = getattr(pltpu.get_tpu_info(), "vmem_capacity_bytes", None)
        if cap:
            return int(cap)
    except Exception:
        pass
    return 64 << 20  # conservative fallback: v7x per-TensorCore VMEM


def _pick_batch_tile(batch, prefer_two_tiles):
    # The batch tile is the lane (last) block dim in the transposed layout, so
    # it must be a multiple of 128 or equal the full batch (legal full-dim block).
    if batch % 128 != 0:
        return batch
    cands = [t for t in (1024, 512, 256, 128) if batch % t == 0]
    if prefer_two_tiles:
        for t in cands:
            if batch // t >= 2:
                return t  # >=2 tiles lets v7x shard the batch axis over 2 TCs
    return cands[0] if cands else batch


def super_mesh_forward(
    x,
    layer_weights,
    sample_n_blocks,
    n_layers_per_block,
    *,
    fold_chain=True,
    force_streamed=False,
):
    """Pallas implementation of SuperMeshBase.forward.

    Applies only the first `sample_n_blocks * n_layers_per_block` layers,
    matching `if k < self.sample_n_blocks * self.n_layers_per_block`.
    """
    n_active = int(sample_n_blocks) * int(n_layers_per_block)
    if n_active == 0:
        return x
    ws = layer_weights[:n_active]  # static slice of the stacked weights

    B, W = x.shape
    assert ws.shape == (n_active, W, W)

    # Layout plumbing outside the kernel: batch onto lanes, weights transposed.
    xt = x.T                          # (W, B)
    ws_t = jnp.swapaxes(ws, 1, 2)     # (n_active, W, W), ws_t[k] = W_k^T

    itemsize_w = jnp.dtype(ws.dtype).itemsize
    itemsize_x = jnp.dtype(x.dtype).itemsize
    w_bytes = n_active * W * W * itemsize_w
    io_bytes = 2 * B * W * itemsize_x

    vmem_cap = _vmem_capacity_bytes()
    vmem_limit = int(min((vmem_cap * 3) // 4, 96 << 20))

    # --------------------------- resident path ------------------------------
    tb = _pick_batch_tile(B, prefer_two_tiles=True)
    # The constant-index weight block is still double-buffered by the pipeline;
    # add double-buffered IO tiles and the f32 compute temporaries.
    resident_est = (
        2 * w_bytes + 2 * 2 * tb * W * itemsize_x + 4 * (W * W + W * tb)
    )
    resident = (not force_streamed) and resident_est <= int(0.8 * vmem_limit)

    if resident:
        n_tiles = B // tb
        fold_flops = 2 * (n_active - 1) * W * W * W * n_tiles + 2 * B * W * W
        chain_flops = 2 * n_active * B * W * W
        cost = pl.CostEstimate(
            flops=fold_flops if fold_chain else chain_flops,
            transcendentals=0,
            bytes_accessed=io_bytes + w_bytes,
        )
        kernel = functools.partial(
            _mesh_resident_kernel, n_active=n_active, fold_chain=fold_chain
        )
        out_t = pl.pallas_call(
            kernel,
            out_shape=jax.ShapeDtypeStruct((W, B), x.dtype),
            grid_spec=pltpu.PrefetchScalarGridSpec(
                num_scalar_prefetch=0,
                grid=(n_tiles,),
                in_specs=[
                    pl.BlockSpec((W, tb), lambda b: (0, b)),
                    # Full active weight stack, same block every step (resident).
                    pl.BlockSpec((n_active, W, W), lambda b: (0, 0, 0)),
                ],
                out_specs=pl.BlockSpec((W, tb), lambda b: (0, b)),
            ),
            compiler_params=pltpu.CompilerParams(
                dimension_semantics=("parallel",),
                vmem_limit_bytes=vmem_limit,
            ),
            cost_estimate=cost,
        )(xt, ws_t)
        return out_t.T

    # --------------------------- streamed fallback --------------------------
    # Big batch tiles: the weight stack is re-streamed once per batch tile.
    tb = _pick_batch_tile(B, prefer_two_tiles=False)
    n_tiles = B // tb
    group = 1
    for g in (8, 4, 2):
        if n_active % g == 0:
            group = g
            break
    n_groups = n_active // group

    cost = pl.CostEstimate(
        flops=2 * n_active * B * W * W,
        transcendentals=0,
        bytes_accessed=io_bytes + n_tiles * w_bytes,  # weights re-read per tile
    )
    kernel = functools.partial(_mesh_streamed_kernel, group=group)
    out_t = pl.pallas_call(
        kernel,
        out_shape=jax.ShapeDtypeStruct((W, B), x.dtype),
        grid_spec=pltpu.PrefetchScalarGridSpec(
            num_scalar_prefetch=0,
            grid=(n_tiles, n_groups),
            in_specs=[
                pl.BlockSpec((W, tb), lambda b, j: (0, b)),
                pl.BlockSpec((group, W, W), lambda b, j: (j, 0, 0)),
            ],
            out_specs=pl.BlockSpec((W, tb), lambda b, j: (0, b)),
            scratch_shapes=[pltpu.VMEM((W, tb), jnp.float32)],
        ),
        compiler_params=pltpu.CompilerParams(
            dimension_semantics=("parallel", "arbitrary"),
            vmem_limit_bytes=vmem_limit,
        ),
        cost_estimate=cost,
    )(xt, ws_t)
    return out_t.T


def reference_forward(x, layer_weights, sample_n_blocks, n_layers_per_block):
    """Pure-JAX reference mirroring the PyTorch loop."""
    n_active = int(sample_n_blocks) * int(n_layers_per_block)
    y = x.astype(jnp.float32)
    for k in range(layer_weights.shape[0]):
        if k < n_active:
            y = y @ layer_weights[k].astype(jnp.float32)
    return y.astype(x.dtype)


if __name__ == "__main__":
    def run_case(batch, n_waveguides, n_blocks, n_layers_per_block,
                 sample_n_blocks, **kw):
        assert n_blocks % 2 == 0  # SuperMeshBase assert
        n_layers_total = n_blocks * n_layers_per_block
        key = jax.random.PRNGKey(0)
        kx, kw_ = jax.random.split(key)
        x = jax.random.normal(kx, (batch, n_waveguides), dtype=jnp.float32)
        layer_weights = (
            jax.random.normal(
                kw_, (n_layers_total, n_waveguides, n_waveguides), dtype=jnp.float32
            )
            / jnp.sqrt(jnp.float32(n_waveguides))
        )
        out = super_mesh_forward(
            x, layer_weights, sample_n_blocks, n_layers_per_block, **kw
        )
        out = jax.block_until_ready(out)
        ref = reference_forward(x, layer_weights, sample_n_blocks, n_layers_per_block)
        assert out.shape == x.shape and out.dtype == x.dtype
        assert jnp.allclose(out, ref, atol=1e-4, rtol=1e-4), "mismatch vs reference"

    # 1) tiny arch-dict analog (n_waveguides=8, n_blocks=4, n_layers_per_block=2,
    #    sample_n_blocks=2): resident path, folded chain.
    run_case(batch=4, n_waveguides=8, n_blocks=4, n_layers_per_block=2,
             sample_n_blocks=2)
    # 2) same config, exact per-layer chain (no fold): matches reference FP order.
    run_case(batch=4, n_waveguides=8, n_blocks=4, n_layers_per_block=2,
             sample_n_blocks=2, fold_chain=False)
    # 3) lane-dense tiled batch (two 128-wide tiles -> v7x megacore sharding).
    run_case(batch=256, n_waveguides=16, n_blocks=4, n_layers_per_block=3,
             sample_n_blocks=2)
    # 4) streamed fallback path (forced), grouped layers per grid step.
    run_case(batch=4, n_waveguides=8, n_blocks=4, n_layers_per_block=2,
             sample_n_blocks=2, force_streamed=True)

    print("KERNEL_OK")
</pallas_src>

<mosaic_0001>
module attributes {stable_mosaic.version = 11 : i64} {
  func.func @_mesh_resident_kernel(%arg0: i32, %arg1: memref<8x4xf32, #tpu.memory_space<vmem>>, %arg2: memref<4x8x8xf32, #tpu.memory_space<vmem>>, %arg3: memref<8x4xf32, #tpu.memory_space<vmem>>) attributes {dimension_semantics = [#tpu.dimension_semantics<parallel>], iteration_bounds = array<i64: 1>, scalar_prefetch = 0 : i64, scratch_operands = 0 : i64, tpu.core_type = #tpu.core_type<tc>, window_params = [{transform_indices = @transform_0, window_bounds = array<i64: 8, 4>}, {pipeline_mode = #tpu.pipeline_mode<synchronous>, transform_indices = @transform_1, window_bounds = array<i64: 4, 8, 8>}, {transform_indices = @transform_2, window_bounds = array<i64: 8, 4>}]} {
    %c0 = arith.constant 0 : index
    %c0_0 = arith.constant 0 : index
    %0 = vector.load %arg1[%c0, %c0_0] : memref<8x4xf32, #tpu.memory_space<vmem>>, vector<8x4xf32>
    %c3 = arith.constant 3 : index
    %c0_1 = arith.constant 0 : index
    %c0_2 = arith.constant 0 : index
    %1 = vector.load %arg2[%c3, %c0_1, %c0_2] : memref<4x8x8xf32, #tpu.memory_space<vmem>>, vector<1x8x8xf32>
    %2 = vector.shape_cast %1 : vector<1x8x8xf32> to vector<8x8xf32>
    %c2 = arith.constant 2 : index
    %c0_3 = arith.constant 0 : index
    %c0_4 = arith.constant 0 : index
    %3 = vector.load %arg2[%c2, %c0_3, %c0_4] : memref<4x8x8xf32, #tpu.memory_space<vmem>>, vector<1x8x8xf32>
    %4 = vector.shape_cast %3 : vector<1x8x8xf32> to vector<8x8xf32>
    %cst = arith.constant dense<0.000000e+00> : vector<8x8xf32>
    %5 = tpu.matmul %2, %4, %cst {dimension_numbers = #tpu.dot_dimension_numbers<[1], [0], [0], [1], [0, 0, 1, 1], [], []>} : vector<8x8xf32>, vector<8x8xf32>, vector<8x8xf32> -> vector<8x8xf32>
    %c1 = arith.constant 1 : index
    %c0_5 = arith.constant 0 : index
    %c0_6 = arith.constant 0 : index
    %6 = vector.load %arg2[%c1, %c0_5, %c0_6] : memref<4x8x8xf32, #tpu.memory_space<vmem>>, vector<1x8x8xf32>
    %7 = vector.shape_cast %6 : vector<1x8x8xf32> to vector<8x8xf32>
    %cst_7 = arith.constant dense<0.000000e+00> : vector<8x8xf32>
    %8 = tpu.matmul %5, %7, %cst_7 {dimension_numbers = #tpu.dot_dimension_numbers<[1], [0], [0], [1], [0, 0, 1, 1], [], []>} : vector<8x8xf32>, vector<8x8xf32>, vector<8x8xf32> -> vector<8x8xf32>
    %c0_8 = arith.constant 0 : index
    %c0_9 = arith.constant 0 : index
    %c0_10 = arith.constant 0 : index
    %9 = vector.load %arg2[%c0_8, %c0_9, %c0_10] : memref<4x8x8xf32, #tpu.memory_space<vmem>>, vector<1x8x8xf32>
    %10 = vector.shape_cast %9 : vector<1x8x8xf32> to vector<8x8xf32>
    %cst_11 = arith.constant dense<0.000000e+00> : vector<8x8xf32>
    %11 = tpu.matmul %8, %10, %cst_11 {dimension_numbers = #tpu.dot_dimension_numbers<[1], [0], [0], [1], [0, 0, 1, 1], [], []>} : vector<8x8xf32>, vector<8x8xf32>, vector<8x8xf32> -> vector<8x8xf32>
    %cst_12 = arith.constant dense<0.000000e+00> : vector<8x4xf32>
    %12 = tpu.matmul %11, %0, %cst_12 {dimension_numbers = #tpu.dot_dimension_numbers<[1], [0], [0], [1], [0, 0, 1, 1], [], []>} : vector<8x8xf32>, vector<8x4xf32>, vector<8x4xf32> -> vector<8x4xf32>
    %c0_13 = arith.constant 0 : index
    %c0_14 = arith.constant 0 : index
    %13 = vector.load %arg3[%c0_13, %c0_14] : memref<8x4xf32, #tpu.memory_space<vmem>>, vector<8x4xf32>
    tpu.vector_store %arg3[%c0_13, %c0_14], %12 {strides = array<i32>} : memref<8x4xf32, #tpu.memory_space<vmem>>, vector<8x4xf32>,
    return
  }
  func.func @transform_0(%arg0: i32) -> (i32, i32) {
    %c0_i32 = arith.constant 0 : i32
    %c0_i32_0 = arith.constant 0 : i32
    return %c0_i32, %arg0 : i32, i32
  }
  func.func @transform_1(%arg0: i32) -> (i32, i32, i32) {
    %c0_i32 = arith.constant 0 : i32
    %c0_i32_0 = arith.constant 0 : i32
    %c0_i32_1 = arith.constant 0 : i32
    %c0_i32_2 = arith.constant 0 : i32
    return %c0_i32, %c0_i32_0, %c0_i32_1 : i32, i32, i32
  }
  func.func @transform_2(%arg0: i32) -> (i32, i32) {
    %c0_i32 = arith.constant 0 : i32
    %c0_i32_0 = arith.constant 0 : i32
    return %c0_i32, %arg0 : i32, i32
  }
}

</mosaic_0001>

<llo_original>
// kernel: tpu_custom_call.1
$region0: #{tpu_custom_call.1}
  #allocation0 [shape = 'u32[]', space=smem, size = 0x4, offset = 0x4, fixed_abs, tag = 'smem constant byte address 0x4 - core index']
  #allocation1 [shape = 'u32[144,128]{1,0:T(1,128)}', space=vmem, size = 0x12000, scoped, tag = 'internal scratch']
  %s0 = inlined_call_operand.vmem [shape: f32[8,4], index: 0, kind: input, shape index: {}]
  %s1 = inlined_call_operand.hbm [shape: f32[4,8,8], index: 1, kind: input, shape index: {}]
  %s2 = inlined_call_operand.vmem [shape: f32[8,4], index: 2, kind: output, shape index: {}]
  %s3 = sld [smem:[#allocation0]]
  $region22: #{tpu_custom_call.1} parent=0
    _
  %s5 = ssub.s32 1, %s3
  %s6 = scalar_select 0, %s5, %s3
  $region1: #{tpu_custom_call.1} parent=0
    #allocation2 [shape = 'u8[16384]{0}', space=vmem, size = 0x4000, scoped, tag = 'input window, operand 1, single buffered']
    #allocation3 [shape = 's32[1]{0}', space=sflag, size = 0x4, scoped, tag = 'scoped memory for tpu_custom_call.1']
    %7 = vsyncpa [#allocation3], 0
    // Predicated region
    $region2: #{tpu_custom_call.1} parent=1 // pred_check
      _
    $region3: #{tpu_custom_call.1} parent=1 // pred_check_branch
      %9 = sbr.rel (0) target = $region5
    $region4: #{tpu_custom_call.1} parent=1 // pred_region
      _
    $region5: #{tpu_custom_call.1} parent=1 // pred_fallthru
      _
    // Predicated region
    $region6: #{tpu_custom_call.1} parent=1 // pred_check
      _
    $region7: #{tpu_custom_call.1} parent=1 // pred_check_branch
      %11 = sbr.rel (0) target = $region9
    $region8: #{tpu_custom_call.1} parent=1 // pred_region
      %s13 = ssub.s32 512, 512
      %14 = vsyncadd [#allocation3], %s13
      %s15 = sshll.u32 [#allocation2], 4
      %s16 = int_to_ptr.vmem [resolvable:$true] %s15
      %21 = dma.hbm_to_vmem [thread:$0]  %s1, 512, %s16, [#allocation3], 128, 128, 8
    $region9: #{tpu_custom_call.1} parent=1 // pred_fallthru
      _
    // Predicated region
    $region10: #{tpu_custom_call.1} parent=1 // pred_check
      _
    $region11: #{tpu_custom_call.1} parent=1 // pred_check_branch
      %23 = sbr.rel (0) target = $region13
    $region12: #{tpu_custom_call.1} parent=1 // pred_region
      %24 = dma.done [#allocation3], 512
    $region13: #{tpu_custom_call.1} parent=1 // pred_fallthru
      _
    %v25 = vld [vmem:[%s0] sm:$0xff]
    %s26 = scalar_lea.vmem [#allocation2], 24
    %v27 = vld [vmem:[%s26] sm:$0xff]
    %s28 = scalar_lea.vmem [#allocation2], 16
    %v29 = vld [vmem:[%s28] sm:$0xff]
    %vm30 = vcmask 64512
    %v32 = vsel %vm30, %v27, 0
    %34 = vmatprep.subr.mxu0 0.0
    %35 = vmatpush1.msra.mxu0 0.0
    %36 = vmatprep.subr.mxu0 0.0
    %37 = vmatpush1.msra.mxu0 0.0
    %38 = vmatprep.subr.mxu0 0.0
    %39 = vmatpush1.msra.mxu0 0.0
    %40 = vmatprep.subr.mxu0 0.0
    %41 = vmatpush1.msra.mxu0 0.0
    %42 = vmatprep.subr.mxu0 0.0
    %43 = vmatpush1.msra.mxu0 0.0
    %44 = vmatprep.subr.mxu0 0.0
    %45 = vmatpush1.msra.mxu0 0.0
    %46 = vmatprep.subr.mxu0 0.0
    %47 = vmatpush1.msra.mxu0 0.0
    %48 = vmatprep.subr.mxu0 0.0
    %49 = vmatpush1.msra.mxu0 0.0
    %50 = vmatprep.subr.mxu0 0.0
    %51 = vmatpush1.msra.mxu0 0.0
    %52 = vmatprep.subr.mxu0 0.0
    %53 = vmatpush1.msra.mxu0 0.0
    %54 = vmatprep.subr.mxu0 0.0
    %55 = vmatpush1.msra.mxu0 0.0
    %56 = vmatprep.subr.mxu0 0.0
    %57 = vmatpush1.msra.mxu0 0.0
    %58 = vmatprep.subr.mxu0 0.0
    %59 = vmatpush1.msra.mxu0 0.0
    %60 = vmatprep.subr.mxu0 0.0
    %61 = vmatpush1.msra.mxu0 0.0
    %62 = vmatprep.subr.mxu0 0.0
    %63 = vmatpush1.msra.mxu0 0.0
    %64 = vmatprep.subr.mxu0 0.0
    %65 = vmatpush1.msra.mxu0 %v29
    %66 = vmatprep.subr.mxu0 0.0
    %67 = vmatpush2.msra.mxu0 0.0
    %68 = vmatprep.subr.mxu0 0.0
    %69 = vmatpush2.msra.mxu0 0.0
    %70 = vmatprep.subr.mxu0 0.0
    %71 = vmatpush2.msra.mxu0 0.0
    %72 = vmatprep.subr.mxu0 0.0
    %73 = vmatpush2.msra.mxu0 0.0
    %74 = vmatprep.subr.mxu0 0.0
    %75 = vmatpush2.msra.mxu0 0.0
    %76 = vmatprep.subr.mxu0 0.0
    %77 = vmatpush2.msra.mxu0 0.0
    %78 = vmatprep.subr.mxu0 0.0
    %79 = vmatpush2.msra.mxu0 0.0
    %80 = vmatprep.subr.mxu0 0.0
    %81 = vmatpush2.msra.mxu0 0.0
    %82 = vmatprep.subr.mxu0 0.0
    %83 = vmatpush2.msra.mxu0 0.0
    %84 = vmatprep.subr.mxu0 0.0
    %85 = vmatpush2.msra.mxu0 0.0
    %86 = vmatprep.subr.mxu0 0.0
    %87 = vmatpush2.msra.mxu0 0.0
    %88 = vmatprep.subr.mxu0 0.0
    %89 = vmatpush2.msra.mxu0 0.0
    %90 = vmatprep.subr.mxu0 0.0
    %91 = vmatpush2.msra.mxu0 0.0
    %92 = vmatprep.subr.mxu0 0.0
    %93 = vmatpush2.msra.mxu0 0.0
    %94 = vmatprep.subr.mxu0 0.0
    %95 = vmatpush2.msra.mxu0 0.0
    %96 = vmatprep.subr.mxu0 0.0
    %97 = vmatpush2.msra.mxu0 0.0
    %98 = vmatprep.mubr.f32.mxu0 0.0
    %99 = vmatmul.mubr.f32.gmra.mxu0 %v32
    %v100 = vpop.f32.mrf.mxu0
    %v101 = vadd.f32 0.0, %v100
    %v102 = vpop.f32.mrf.mxu0
    %103 = vdwg.mxu0
    %s104 = scalar_lea.vmem [#allocation2], 8
    %v105 = vld [vmem:[%s104] sm:$0xff]
    %v107 = vsel %vm30, %v101, 0
    %109 = vmatprep.subr.mxu0 0.0
    %110 = vmatpush1.msra.mxu0 0.0
    %111 = vmatprep.subr.mxu0 0.0
    %112 = vmatpush1.msra.mxu0 0.0
    %113 = vmatprep.subr.mxu0 0.0
    %114 = vmatpush1.msra.mxu0 0.0
    %115 = vmatprep.subr.mxu0 0.0
    %116 = vmatpush1.msra.mxu0 0.0
    %117 = vmatprep.subr.mxu0 0.0
    %118 = vmatpush1.msra.mxu0 0.0
    %119 = vmatprep.subr.mxu0 0.0
    %120 = vmatpush1.msra.mxu0 0.0
    %121 = vmatprep.subr.mxu0 0.0
    %122 = vmatpush1.msra.mxu0 0.0
    %123 = vmatprep.subr.mxu0 0.0
    %124 = vmatpush1.msra.mxu0 0.0
    %125 = vmatprep.subr.mxu0 0.0
    %126 = vmatpush1.msra.mxu0 0.0
    %127 = vmatprep.subr.mxu0 0.0
    %128 = vmatpush1.msra.mxu0 0.0
    %129 = vmatprep.subr.mxu0 0.0
    %130 = vmatpush1.msra.mxu0 0.0
    %131 = vmatprep.subr.mxu0 0.0
    %132 = vmatpush1.msra.mxu0 0.0
    %133 = vmatprep.subr.mxu0 0.0
    %134 = vmatpush1.msra.mxu0 0.0
    %135 = vmatprep.subr.mxu0 0.0
    %136 = vmatpush1.msra.mxu0 0.0
    %137 = vmatprep.subr.mxu0 0.0
    %138 = vmatpush1.msra.mxu0 0.0
    %139 = vmatprep.subr.mxu0 0.0
    %140 = vmatpush1.msra.mxu0 %v105
    %141 = vmatprep.subr.mxu0 0.0
    %142 = vmatpush2.msra.mxu0 0.0
    %143 = vmatprep.subr.mxu0 0.0
    %144 = vmatpush2.msra.mxu0 0.0
    %145 = vmatprep.subr.mxu0 0.0
    %146 = vmatpush2.msra.mxu0 0.0
    %147 = vmatprep.subr.mxu0 0.0
    %148 = vmatpush2.msra.mxu0 0.0
    %149 = vmatprep.subr.mxu0 0.0
    %150 = vmatpush2.msra.mxu0 0.0
    %151 = vmatprep.subr.mxu0 0.0
    %152 = vmatpush2.msra.mxu0 0.0
    %153 = vmatprep.subr.mxu0 0.0
    %154 = vmatpush2.msra.mxu0 0.0
    %155 = vmatprep.subr.mxu0 0.0
    %156 = vmatpush2.msra.mxu0 0.0
    %157 = vmatprep.subr.mxu0 0.0
    %158 = vmatpush2.msra.mxu0 0.0
    %159 = vmatprep.subr.mxu0 0.0
    %160 = vmatpush2.msra.mxu0 0.0
    %161 = vmatprep.subr.mxu0 0.0
    %162 = vmatpush2.msra.mxu0 0.0
    %163 = vmatprep.subr.mxu0 0.0
    %164 = vmatpush2.msra.mxu0 0.0
    %165 = vmatprep.subr.mxu0 0.0
    %166 = vmatpush2.msra.mxu0 0.0
    %167 = vmatprep.subr.mxu0 0.0
    %168 = vmatpush2.msra.mxu0 0.0
    %169 = vmatprep.subr.mxu0 0.0
    %170 = vmatpush2.msra.mxu0 0.0
    %171 = vmatprep.subr.mxu0 0.0
    %172 = vmatpush2.msra.mxu0 0.0
    %173 = vmatprep.mubr.f32.mxu0 0.0
    %174 = vmatmul.mubr.f32.gmra.mxu0 %v107
    %v175 = vpop.f32.mrf.mxu0
    %v176 = vadd.f32 0.0, %v175
    %v177 = vpop.f32.mrf.mxu0
    %178 = vdwg.mxu0
    %v179 = vld [vmem:[#allocation2] sm:$0xff]
    %v181 = vsel %vm30, %v176, 0
    %183 = vmatprep.subr.mxu0 0.0
    %184 = vmatpush1.msra.mxu0 0.0
    %185 = vmatprep.subr.mxu0 0.0
    %186 = vmatpush1.msra.mxu0 0.0
    %187 = vmatprep.subr.mxu0 0.0
    %188 = vmatpush1.msra.mxu0 0.0
    %189 = vmatprep.subr.mxu0 0.0
    %190 = vmatpush1.msra.mxu0 0.0
    %191 = vmatprep.subr.mxu0 0.0
    %192 = vmatpush1.msra.mxu0 0.0
    %193 = vmatprep.subr.mxu0 0.0
    %194 = vmatpush1.msra.mxu0 0.0
    %195 = vmatprep.subr.mxu0 0.0
    %196 = vmatpush1.msra.mxu0 0.0
    %197 = vmatprep.subr.mxu0 0.0
    %198 = vmatpush1.msra.mxu0 0.0
    %199 = vmatprep.subr.mxu0 0.0
    %200 = vmatpush1.msra.mxu0 0.0
    %201 = vmatprep.subr.mxu0 0.0
    %202 = vmatpush1.msra.mxu0 0.0
    %203 = vmatprep.subr.mxu0 0.0
    %204 = vmatpush1.msra.mxu0 0.0
    %205 = vmatprep.subr.mxu0 0.0
    %206 = vmatpush1.msra.mxu0 0.0
    %207 = vmatprep.subr.mxu0 0.0
    %208 = vmatpush1.msra.mxu0 0.0
    %209 = vmatprep.subr.mxu0 0.0
    %210 = vmatpush1.msra.mxu0 0.0
    %211 = vmatprep.subr.mxu0 0.0
    %212 = vmatpush1.msra.mxu0 0.0
    %213 = vmatprep.subr.mxu0 0.0
    %214 = vmatpush1.msra.mxu0 %v179
    %215 = vmatprep.subr.mxu0 0.0
    %216 = vmatpush2.msra.mxu0 0.0
    %217 = vmatprep.subr.mxu0 0.0
    %218 = vmatpush2.msra.mxu0 0.0
    %219 = vmatprep.subr.mxu0 0.0
    %220 = vmatpush2.msra.mxu0 0.0
    %221 = vmatprep.subr.mxu0 0.0
    %222 = vmatpush2.msra.mxu0 0.0
    %223 = vmatprep.subr.mxu0 0.0
    %224 = vmatpush2.msra.mxu0 0.0
    %225 = vmatprep.subr.mxu0 0.0
    %226 = vmatpush2.msra.mxu0 0.0
    %227 = vmatprep.subr.mxu0 0.0
    %228 = vmatpush2.msra.mxu0 0.0
    %229 = vmatprep.subr.mxu0 0.0
    %230 = vmatpush2.msra.mxu0 0.0
    %231 = vmatprep.subr.mxu0 0.0
    %232 = vmatpush2.msra.mxu0 0.0
    %233 = vmatprep.subr.mxu0 0.0
    %234 = vmatpush2.msra.mxu0 0.0
    %235 = vmatprep.subr.mxu0 0.0
    %236 = vmatpush2.msra.mxu0 0.0
    %237 = vmatprep.subr.mxu0 0.0
    %238 = vmatpush2.msra.mxu0 0.0
    %239 = vmatprep.subr.mxu0 0.0
    %240 = vmatpush2.msra.mxu0 0.0
    %241 = vmatprep.subr.mxu0 0.0
    %242 = vmatpush2.msra.mxu0 0.0
    %243 = vmatprep.subr.mxu0 0.0
    %244 = vmatpush2.msra.mxu0 0.0
    %245 = vmatprep.subr.mxu0 0.0
    %246 = vmatpush2.msra.mxu0 0.0
    %247 = vmatprep.mubr.f32.mxu0 0.0
    %248 = vmatmul.mubr.f32.gmra.mxu0 %v181
    %v249 = vpop.f32.mrf.mxu0
    %v250 = vadd.f32 0.0, %v249
    %v251 = vpop.f32.mrf.mxu0
    %252 = vdwg.mxu0
    %v254 = vsel %vm30, %v250, 0
    %256 = vmatprep.subr.mxu0 0.0
    %257 = vmatpush1.msra.mxu0 0.0
    %258 = vmatprep.subr.mxu0 0.0
    %259 = vmatpush1.msra.mxu0 0.0
    %260 = vmatprep.subr.mxu0 0.0
    %261 = vmatpush1.msra.mxu0 0.0
    %262 = vmatprep.subr.mxu0 0.0
    %263 = vmatpush1.msra.mxu0 0.0
    %264 = vmatprep.subr.mxu0 0.0
    %265 = vmatpush1.msra.mxu0 0.0
    %266 = vmatprep.subr.mxu0 0.0
    %267 = vmatpush1.msra.mxu0 0.0
    %268 = vmatprep.subr.mxu0 0.0
    %269 = vmatpush1.msra.mxu0 0.0
    %270 = vmatprep.subr.mxu0 0.0
    %271 = vmatpush1.msra.mxu0 0.0
    %272 = vmatprep.subr.mxu0 0.0
    %273 = vmatpush1.msra.mxu0 0.0
    %274 = vmatprep.subr.mxu0 0.0
    %275 = vmatpush1.msra.mxu0 0.0
    %276 = vmatprep.subr.mxu0 0.0
    %277 = vmatpush1.msra.mxu0 0.0
    %278 = vmatprep.subr.mxu0 0.0
    %279 = vmatpush1.msra.mxu0 0.0
    %280 = vmatprep.subr.mxu0 0.0
    %281 = vmatpush1.msra.mxu0 0.0
    %282 = vmatprep.subr.mxu0 0.0
    %283 = vmatpush1.msra.mxu0 0.0
    %284 = vmatprep.subr.mxu0 0.0
    %285 = vmatpush1.msra.mxu0 0.0
    %286 = vmatprep.subr.mxu0 0.0
    %287 = vmatpush1.msra.mxu0 %v25
    %288 = vmatprep.subr.mxu0 0.0
    %289 = vmatpush2.msra.mxu0 0.0
    %290 = vmatprep.subr.mxu0 0.0
    %291 = vmatpush2.msra.mxu0 0.0
    %292 = vmatprep.subr.mxu0 0.0
    %293 = vmatpush2.msra.mxu0 0.0
    %294 = vmatprep.subr.mxu0 0.0
    %295 = vmatpush2.msra.mxu0 0.0
    %296 = vmatprep.subr.mxu0 0.0
    %297 = vmatpush2.msra.mxu0 0.0
    %298 = vmatprep.subr.mxu0 0.0
    %299 = vmatpush2.msra.mxu0 0.0
    %300 = vmatprep.subr.mxu0 0.0
    %301 = vmatpush2.msra.mxu0 0.0
    %302 = vmatprep.subr.mxu0 0.0
    %303 = vmatpush2.msra.mxu0 0.0
    %304 = vmatprep.subr.mxu0 0.0
    %305 = vmatpush2.msra.mxu0 0.0
    %306 = vmatprep.subr.mxu0 0.0
    %307 = vmatpush2.msra.mxu0 0.0
    %308 = vmatprep.subr.mxu0 0.0
    %309 = vmatpush2.msra.mxu0 0.0
    %310 = vmatprep.subr.mxu0 0.0
    %311 = vmatpush2.msra.mxu0 0.0
    %312 = vmatprep.subr.mxu0 0.0
    %313 = vmatpush2.msra.mxu0 0.0
    %314 = vmatprep.subr.mxu0 0.0
    %315 = vmatpush2.msra.mxu0 0.0
    %316 = vmatprep.subr.mxu0 0.0
    %317 = vmatpush2.msra.mxu0 0.0
    %318 = vmatprep.subr.mxu0 0.0
    %319 = vmatpush2.msra.mxu0 0.0
    %320 = vmatprep.mubr.f32.mxu0 0.0
    %321 = vmatmul.mubr.f32.gmra.mxu0 %v254
    %v322 = vpop.f32.mrf.mxu0
    %v323 = vadd.f32 0.0, %v322
    %v324 = vpop.f32.mrf.mxu0
    %325 = vdwg.mxu0
    %vm326 = vcmask 31744
    %327 = vst.msk [vmem:[%s2] sm:$0xff] %vm326, %v323
    // Predicated region
    $region14: #{tpu_custom_call.1} parent=1 // pred_check
      _
    $region15: #{tpu_custom_call.1} parent=1 // pred_check_branch
      %329 = sbr.rel (0) target = $region17
    $region16: #{tpu_custom_call.1} parent=1 // pred_region
      _
    $region17: #{tpu_custom_call.1} parent=1 // pred_fallthru
      _
    // Predicated region
    $region18: #{tpu_custom_call.1} parent=1 // pred_check
      _
    $region19: #{tpu_custom_call.1} parent=1 // pred_check_branch
      %331 = sbr.rel (0) target = $region21
    $region20: #{tpu_custom_call.1} parent=1 // pred_region
      _
    $region21: #{tpu_custom_call.1} parent=1 // pred_fallthru
      _
    %332 = vsyncpa [#allocation3], 1

</llo_original>
